<compile_context>
chip_gen: v5e
topology: v5e:2x2
jax: 0.10.0
libtpu: 0.0.40
codegen_flags: <defaults>
</compile_context>

<pallas_src>
import functools

import jax
import jax.numpy as jnp
import numpy as np
from jax.experimental import pallas as pl
from jax.experimental.pallas import tpu as pltpu


def _pool_kernel(x_ref, pooled_ref, acc_ref, *, inv_hw):
    # x_ref: (1, C, hw_tile) | pooled_ref: (1, C, 1) f32 | acc_ref: (C, 1) f32
    t = pl.program_id(1)

    @pl.when(t == 0)
    def _():
        acc_ref[...] = jnp.zeros_like(acc_ref)

    x = x_ref[0].astype(jnp.float32)                        # (C, hw_tile)
    acc_ref[...] += jnp.sum(x, axis=-1, keepdims=True)      # (C, 1)

    @pl.when(t == pl.num_programs(1) - 1)
    def _():
        pooled_ref[0] = acc_ref[...] * inv_hw


def _gate_kernel(pooled_ref, w1t_ref, w2t_ref, gate_ref):
    # pooled_ref: (B, C) f32 | w1t: (C, hidden) | w2t: (hidden, C) | gate: (B, C)
    p = pooled_ref[...]
    h = jnp.dot(p, w1t_ref[...], preferred_element_type=jnp.float32)
    h = jnp.maximum(h, 0.0)                                 # (B, hidden)
    y = jnp.dot(h, w2t_ref[...], preferred_element_type=jnp.float32)
    gate_ref[...] = jax.nn.sigmoid(y)                       # (B, C)


def _scale_kernel(x_ref, gate_ref, o_ref):
    # x_ref/o_ref: (1, C, hw_tile) | gate_ref: (1, C, 1) f32
    g = gate_ref[0]                                         # (C, 1)
    x = x_ref[0].astype(jnp.float32)                        # (C, hw_tile)
    o_ref[0] = (x * g).astype(o_ref.dtype)                  # lane-broadcast multiply


def _pick_hw_tile(hw, c, dtype_bytes, target_bytes=1 << 20):
    """Largest lane-dense tile (multiple of 128) that divides hw, ~<= target_bytes."""
    if hw % 128 != 0:
        return hw                       # full extent (equal-to-array-dim is legal)
    max_lanes = max(128, target_bytes // max(1, c * dtype_bytes))
    tile = min(hw, (max_lanes // 128) * 128)
    while hw % tile != 0:
        tile -= 128
    return max(tile, 128)


def se_layer(x, w1, w2):
    """x: (B, C, H, W); w1: (C//r, C), w2: (C, C//r) in PyTorch nn.Linear layout."""
    B, C, H, W = x.shape
    HW = H * W
    x3 = x.reshape(B, C, HW)            # free contiguous reshape -> lane-dense

    hw_tile = _pick_hw_tile(HW, C, x.dtype.itemsize)
    n_hw = HW // hw_tile

    # ---- Pass 1: global average pool -> pooled (B, C, 1) in f32 ----
    pooled = pl.pallas_call(
        functools.partial(_pool_kernel, inv_hw=np.float32(1.0 / HW)),
        out_shape=jax.ShapeDtypeStruct((B, C, 1), jnp.float32),
        grid_spec=pltpu.PrefetchScalarGridSpec(
            num_scalar_prefetch=0,
            grid=(B, n_hw),
            in_specs=[pl.BlockSpec((1, C, hw_tile), lambda b, t: (b, 0, t))],
            out_specs=pl.BlockSpec((1, C, 1), lambda b, t: (b, 0, 0)),
            scratch_shapes=[pltpu.VMEM((C, 1), jnp.float32)],
        ),
        compiler_params=pltpu.CompilerParams(
            dimension_semantics=("parallel", "arbitrary")),
    )(x3)

    # ---- Pass 2: excitation as one batched matmul pair -> gates (B, C) ----
    w1t = jnp.transpose(w1)             # (C, hidden)
    w2t = jnp.transpose(w2)             # (hidden, C)
    pooled2 = pooled[:, :, 0]           # tiny XLA squeeze (B*C elements)
    gates = pl.pallas_call(
        _gate_kernel,
        out_shape=jax.ShapeDtypeStruct((B, C), jnp.float32),
    )(pooled2, w1t, w2t)
    gates3 = gates[:, :, None]          # tiny XLA expand for lane-broadcast layout

    # ---- Pass 3: per-channel rescale with lane-dense tiles ----
    out3 = pl.pallas_call(
        _scale_kernel,
        out_shape=jax.ShapeDtypeStruct((B, C, HW), x.dtype),
        grid_spec=pltpu.PrefetchScalarGridSpec(
            num_scalar_prefetch=0,
            grid=(B, n_hw),
            in_specs=[
                pl.BlockSpec((1, C, hw_tile), lambda b, t: (b, 0, t)),
                pl.BlockSpec((1, C, 1), lambda b, t: (b, 0, 0)),
            ],
            out_specs=pl.BlockSpec((1, C, hw_tile), lambda b, t: (b, 0, t)),
        ),
        compiler_params=pltpu.CompilerParams(
            dimension_semantics=("parallel", "parallel")),
    )(x3, gates3)

    return out3.reshape(B, C, H, W)


def se_layer_ref(x, w1, w2):
    """Pure-JAX reference mirroring the PyTorch forward."""
    b, c, _, _ = x.shape
    y = jnp.mean(x, axis=(2, 3))                      # (b, c)
    y = jnp.maximum(y @ w1.T, 0.0)                    # (b, c//r)
    y = jax.nn.sigmoid(y @ w2.T)                      # (b, c)
    return x * y.reshape(b, c, 1, 1)


if __name__ == "__main__":
    B, C, H, W = 2, 32, 16, 16
    reduction = 16
    hidden = C // reduction  # = 2

    key = jax.random.PRNGKey(0)
    kx, k1, k2 = jax.random.split(key, 3)
    x = jax.random.normal(kx, (B, C, H, W), dtype=jnp.float32)
    # PyTorch nn.Linear weight layout: (out_features, in_features), bias-free.
    w1 = jax.random.normal(k1, (hidden, C), dtype=jnp.float32) * (1.0 / np.sqrt(C))
    w2 = jax.random.normal(k2, (C, hidden), dtype=jnp.float32) * (1.0 / np.sqrt(hidden))

    out = se_layer(x, w1, w2)
    out = jax.block_until_ready(out)

    ref = se_layer_ref(x, w1, w2)
    np.testing.assert_allclose(np.asarray(out), np.asarray(ref), rtol=1e-5, atol=1e-5)

    print("KERNEL_OK")
</pallas_src>

<mosaic_0001>
module attributes {stable_mosaic.version = 11 : i64} {
  func.func @_pool_kernel(%arg0: i32, %arg1: i32, %arg2: memref<1x32x256xf32, #tpu.memory_space<vmem>>, %arg3: memref<1x32x1xf32, #tpu.memory_space<vmem>>, %arg4: memref<32x1xf32, #tpu.memory_space<vmem>>) attributes {dimension_semantics = [#tpu.dimension_semantics<parallel>, #tpu.dimension_semantics<arbitrary>], iteration_bounds = array<i64: 2, 1>, scalar_prefetch = 0 : i64, scratch_operands = 1 : i64, tpu.core_type = #tpu.core_type<tc>, window_params = [{transform_indices = @transform_0, window_bounds = array<i64: 1, 32, 256>}, {transform_indices = @transform_1, window_bounds = array<i64: 1, 32, 1>}]} {
    %c0_i32 = arith.constant 0 : i32
    %0 = arith.cmpi eq, %arg1, %c0_i32 : i32
    %1 = arith.extui %0 : i1 to i32
    %c0_i32_0 = arith.constant 0 : i32
    %2 = arith.cmpi ne, %1, %c0_i32_0 : i32
    scf.if %2 {
      %cst_9 = arith.constant 0.000000e+00 : f32
      %13 = vector.broadcast %cst_9 : f32 to vector<32x1xf32>
      %c0_10 = arith.constant 0 : index
      %c0_11 = arith.constant 0 : index
      %14 = vector.load %arg4[%c0_10, %c0_11] : memref<32x1xf32, #tpu.memory_space<vmem>>, vector<32x1xf32>
      tpu.vector_store %arg4[%c0_10, %c0_11], %13 {strides = array<i32>} : memref<32x1xf32, #tpu.memory_space<vmem>>, vector<32x1xf32>,
    } else {
    }
    %c0 = arith.constant 0 : index
    %c0_1 = arith.constant 0 : index
    %c0_2 = arith.constant 0 : index
    %3 = vector.load %arg2[%c0, %c0_1, %c0_2] : memref<1x32x256xf32, #tpu.memory_space<vmem>>, vector<1x32x256xf32>
    %4 = vector.shape_cast %3 : vector<1x32x256xf32> to vector<32x256xf32>
    %c0_3 = arith.constant 0 : index
    %c0_4 = arith.constant 0 : index
    %5 = vector.load %arg4[%c0_3, %c0_4] : memref<32x1xf32, #tpu.memory_space<vmem>>, vector<32x1xf32>
    %cst = arith.constant dense<0.000000e+00> : vector<32xf32>
    %6 = vector.multi_reduction <add>, %4, %cst [1] : vector<32x256xf32> to vector<32xf32>
    %7 = vector.shape_cast %6 : vector<32xf32> to vector<32x1xf32>
    %8 = arith.addf %5, %7 : vector<32x1xf32>
    %c0_5 = arith.constant 0 : index
    %c0_6 = arith.constant 0 : index
    %9 = vector.load %arg4[%c0_5, %c0_6] : memref<32x1xf32, #tpu.memory_space<vmem>>, vector<32x1xf32>
    tpu.vector_store %arg4[%c0_5, %c0_6], %8 {strides = array<i32>} : memref<32x1xf32, #tpu.memory_space<vmem>>, vector<32x1xf32>,
    %c0_i32_7 = arith.constant 0 : i32
    %10 = arith.cmpi eq, %arg1, %c0_i32_7 : i32
    %11 = arith.extui %10 : i1 to i32
    %c0_i32_8 = arith.constant 0 : i32
    %12 = arith.cmpi ne, %11, %c0_i32_8 : i32
    scf.if %12 {
      %c0_9 = arith.constant 0 : index
      %c0_10 = arith.constant 0 : index
      %13 = vector.load %arg4[%c0_9, %c0_10] : memref<32x1xf32, #tpu.memory_space<vmem>>, vector<32x1xf32>
      %cst_11 = arith.constant 3.906250e-03 : f32
      %14 = vector.broadcast %cst_11 : f32 to vector<32x1xf32>
      %15 = arith.mulf %13, %14 : vector<32x1xf32>
      %c0_12 = arith.constant 0 : index
      %c0_13 = arith.constant 0 : index
      %c0_14 = arith.constant 0 : index
      %16 = vector.load %arg3[%c0_12, %c0_13, %c0_14] : memref<1x32x1xf32, #tpu.memory_space<vmem>>, vector<1x32x1xf32>
      %17 = vector.shape_cast %16 : vector<1x32x1xf32> to vector<32x1xf32>
      %18 = vector.shape_cast %15 : vector<32x1xf32> to vector<1x32x1xf32>
      tpu.vector_store %arg3[%c0_12, %c0_13, %c0_14], %18 {strides = array<i32>} : memref<1x32x1xf32, #tpu.memory_space<vmem>>, vector<1x32x1xf32>,
    } else {
    }
    return
  }
  func.func @transform_0(%arg0: i32, %arg1: i32) -> (i32, i32, i32) {
    %c0_i32 = arith.constant 0 : i32
    %c0_i32_0 = arith.constant 0 : i32
    return %arg0, %c0_i32, %arg1 : i32, i32, i32
  }
  func.func @transform_1(%arg0: i32, %arg1: i32) -> (i32, i32, i32) {
    %c0_i32 = arith.constant 0 : i32
    %c0_i32_0 = arith.constant 0 : i32
    %c0_i32_1 = arith.constant 0 : i32
    return %arg0, %c0_i32, %c0_i32_0 : i32, i32, i32
  }
}

</mosaic_0001>

<llo_original>
// kernel: tpu_custom_call.1
$region0: #{tpu_custom_call.1}
  #allocation0 [shape = 'u32[]', space=smem, size = 0x4, offset = 0x4, fixed_abs, tag = 'smem constant byte address 0x4 - core index']
  #allocation1 [shape = 'u32[72,128]{1,0:T(1,128)}', space=vmem, size = 0x9000, scoped, tag = 'internal scratch']
  #allocation2 [shape = 'f32[32,1]{1,0:T(8,128)}', space=vmem, size = 0x4000, scoped, tag = 'scratch operand']
  %s0 = inlined_call_operand.hbm [shape: f32[2,32,256], index: 0, kind: input, shape index: {}]
  %s1 = inlined_call_operand.vmem [shape: f32[2,32,1], index: 1, kind: output, shape index: {}]
  %s2 = sld [smem:[#allocation0]]
  $region49: #{tpu_custom_call.1} parent=0
    _
  %s4 = ssub.s32 1, %s2
  %s5 = scalar_select 0, %s4, %s2
  $region1: #{tpu_custom_call.1} parent=0
    #allocation3 [shape = 'u8[65536]{0}', space=vmem, size = 0x10000, scoped, tag = 'input window, operand 0']
    #allocation4 [shape = 's32[2]{0}', space=sflag, size = 0x8, scoped, tag = 'scoped memory for tpu_custom_call.1']
    %6 = vsyncpa [#allocation4], 0
    %s7 = scalar_lea.sflag [#allocation4], 1
    %8 = vsyncpa %s7, 0
    loop: start=0, step=1, limit=4
    $region2: #{tpu_custom_call.1} parent=1 // loop_pre_header
      _
    $region3: #{tpu_custom_call.1} parent=1 // loop_header
      %s10 = sphi 0, %s14
      %p11 = scmp.ge.s32.totalorder %s10, 4
      %s17 = sphi 0, %s29
      %s18 = sphi 0, %s25
      %s19 = sphi 0, %s17
      %s20 = sphi 0, %s18
      %s21 = sphi 0, %s19
      %s22 = sphi 0, %s20
      %s34 = sphi 0, %s36
      %s37 = sphi 0, %s34
      %s38 = sphi 0, %s37
      %s54 = sphi 0, %s38
      %s60 = sphi 0, %s62
      %s63 = sphi 0, %s60
      %s64 = sphi 0, %s63
      %s80 = sphi 0, %s64
    $region4: #{tpu_custom_call.1} parent=1 // loop_header_branch
      %13 = sbr.rel (%p11) target = $region8
    $region5: #{tpu_custom_call.1} parent=1 // loop_body
      %s15 = ssub.s32 %s10, 1
      %s16 = ssub.s32 %s10, 2
      %s23 = sadd.s32 1, %s18
      %p24 = scmp.ge.s32.totalorder %s23, 1
      %s25 = scalar_select %p24, 0, %s23
      %s26 = sadd.s32 1, %s17
      %s27 = scalar_select %p24, %s26, %s17
      %p28 = scmp.ge.s32.totalorder %s27, 2
      %s29 = scalar_select %p28, 0, %s27
      %s30 = ssub.s32 %s17, %s29
      %s31 = ssub.s32 %s18, %s25
      %s32 = sor.u32 %s30, %s31
      %p33 = scmp.eq.s32.totalorder %s32, 0
      %s35 = sadd.s32 %s34, 1
      %s36 = scalar_select %p33, %s34, %s35
      %p39 = pneg %p33
      %p40 = scmp.eq.s32.totalorder %s10, 1
      %p41 = por %p39, %p40
      %p42 = scmp.ne.s32.totalorder %s34, %s37
      %p43 = scmp.eq.s32.totalorder %s10, 0
      %p44 = por %p42, %p43
      %p45 = scmp.ne.s32.totalorder %s34, %s37
      %p46 = scmp.eq.s32.totalorder %s15, 1
      %p47 = por %p45, %p46
      %p48 = scmp.ne.s32.totalorder %s37, %s38
      %p49 = scmp.eq.s32.totalorder %s15, 0
      %p50 = por %p48, %p49
      %p51 = scmp.ne.s32.totalorder %s37, %s38
      %p52 = scmp.eq.s32.totalorder %s16, 1
      %p53 = por %p51, %p52
      %p55 = scmp.ne.s32.totalorder %s38, %s54
      %p56 = scmp.eq.s32.totalorder %s16, 0
      %p57 = por %p55, %p56
      %s58 = ssub.s32 %s17, %s29
      %p59 = scmp.eq.s32.totalorder %s58, 0
      %s61 = sadd.s32 %s60, 1
      %s62 = scalar_select %p59, %s60, %s61
      %p65 = pneg %p59
      %p66 = scmp.eq.s32.totalorder %s10, 1
      %p67 = por %p65, %p66
      %p68 = scmp.ne.s32.totalorder %s60, %s63
      %p69 = scmp.eq.s32.totalorder %s10, 0
      %p70 = por %p68, %p69
      %p71 = scmp.ne.s32.totalorder %s60, %s63
      %p72 = scmp.eq.s32.totalorder %s15, 1
      %p73 = por %p71, %p72
      %p74 = scmp.ne.s32.totalorder %s63, %s64
      %p75 = scmp.eq.s32.totalorder %s15, 0
      %p76 = por %p74, %p75
      %p77 = scmp.ne.s32.totalorder %s63, %s64
      %p78 = scmp.eq.s32.totalorder %s16, 1
      %p79 = por %p77, %p78
      %p81 = scmp.ne.s32.totalorder %s64, %s80
      %p82 = scmp.eq.s32.totalorder %s16, 0
      %p83 = por %p81, %p82
      %p84 = scmp.le.s32.totalorder 1, %s10
      %p85 = scmp.lt.s32.totalorder %s10, 3
      %p86 = pnand %p84, %p85
      %p87 = pneg %p86
      // Predicated region
      $region9: #{tpu_custom_call.1} parent=5 // pred_check
        _
      $region10: #{tpu_custom_call.1} parent=5 // pred_check_branch
        %89 = sbr.rel (%p86) target = $region12
      $region11: #{tpu_custom_call.1} parent=5 // pred_region
        %s90 = ssub.s32 %s10, 1
      $region12: #{tpu_custom_call.1} parent=5 // pred_fallthru
        _
      %p91 = scmp.lt.s32.totalorder %s10, 2
      // Predicated region
      $region13: #{tpu_custom_call.1} parent=5 // pred_check
        %p92 = pneg %p91
      $region14: #{tpu_custom_call.1} parent=5 // pred_check_branch
        %94 = sbr.rel (%p92) target = $region16
      $region15: #{tpu_custom_call.1} parent=5 // pred_region
        // Predicated region
        $region17: #{tpu_custom_call.1} parent=15 // pred_check
          %p95 = pneg %p44
        $region18: #{tpu_custom_call.1} parent=15 // pred_check_branch
          %97 = sbr.rel (%p95) target = $region20
        $region19: #{tpu_custom_call.1} parent=15 // pred_region
          %s98 = sand.u32 %s34, 1
          %s99 = scalar_lea.sflag [#allocation4], %s98
          %s100 = sand.u32 %s34, 1
          %s101 = smul.addr %s100, 64
          %s102 = scalar_lea.vmem [#allocation3], %s101
          %s103 = smul.u32 2, %s18
          %105 = vsyncadd %s99, 0
          %s106 = smul.addr %s17, 8
          %s107 = sadd.s32 %s103, %s106
          %s108 = smul.addr %s107, 8
          %s109 = scalar_lea.hbm %s0, %s108
          %s110 = sshll.u32 %s109, 4
          %s111 = int_to_ptr.hbm [resolvable:$true] %s110
          %s112 = sshll.u32 %s102, 4
          %s113 = int_to_ptr.vmem [resolvable:$true] %s112
          %118 = dma.hbm_to_vmem [thread:$0]  %s111, 1024, %s113, %s99, 256, 256, 16
        $region20: #{tpu_custom_call.1} parent=15 // pred_fallthru
          _
      $region16: #{tpu_custom_call.1} parent=5 // pred_fallthru
        _
      %p119 = scmp.le.s32.totalorder 1, %s10
      %p120 = scmp.lt.s32.totalorder %s10, 3
      %p121 = pnand %p119, %p120
      %p122 = pneg %p121
      // Predicated region
      $region21: #{tpu_custom_call.1} parent=5 // pred_check
        _
      $region22: #{tpu_custom_call.1} parent=5 // pred_check_branch
        %124 = sbr.rel (%p121) target = $region24
      $region23: #{tpu_custom_call.1} parent=5 // pred_region
        %s125 = ssub.s32 %s10, 1
        %s126 = sand.u32 %s37, 1
        %s127 = scalar_lea.sflag [#allocation4], %s126
        %s128 = sand.u32 %s37, 1
        %s129 = smul.addr %s128, 64
        %s130 = scalar_lea.vmem [#allocation3], %s129
        // Predicated region
        $region25: #{tpu_custom_call.1} parent=23 // pred_check
          %p131 = pneg %p50
        $region26: #{tpu_custom_call.1} parent=23 // pred_check_branch
          %133 = sbr.rel (%p131) target = $region28
        $region27: #{tpu_custom_call.1} parent=23 // pred_region
          %135 = dma.done %s127, 1024
        $region28: #{tpu_custom_call.1} parent=23 // pred_fallthru
          _
        %s136 = sand.u32 %s37, 1
        %s137 = scalar_lea.sflag [#allocation4], %s136
        %s138 = sand.u32 %s37, 1
        %s139 = smul.addr %s138, 64
        %s140 = scalar_lea.vmem [#allocation3], %s139
        %p141 = pneg %p50
        %p142 = pneg %p47
        %p143 = pneg %p76
        %p144 = pneg %p73
        %p145 = scmp.lt.s32.totalorder %s19, 1
        %s146 = scalar_select %p145, %s19, 1
        %s147 = smul.addr %s146, 4
        %s148 = smul.addr %s147, 8
        %s149 = scalar_lea.vmem %s1, %s148
        %s150 = smul.u32 2, %s20
        %p151 = scmp.lt.s32.totalorder %s19, 1
        %s152 = scalar_select %p151, %s19, 1
        %s153 = smul.addr %s152, 4
        %s154 = smul.addr %s153, 8
        %s155 = scalar_lea.vmem %s1, %s154
        %p156 = scmp.eq.s32.totalorder %s20, 0
        // Predicated region
        $region29: #{tpu_custom_call.1} parent=23 // pred_check
          %p157 = pneg %p156
        $region30: #{tpu_custom_call.1} parent=23 // pred_check_branch
          %159 = sbr.rel (%p157) target = $region32
        $region31: #{tpu_custom_call.1} parent=23 // pred_region
          %vm160 = vcmask 7168
          %161 = vst.msk [vmem:[#allocation2] sm:$0xff] %vm160, 0.0
          %162 = vst.msk [vmem:[#allocation2 + $0x8] sm:$0xff] %vm160, 0.0
          %163 = vst.msk [vmem:[#allocation2 + $0x10] sm:$0xff] %vm160, 0.0
          %164 = vst.msk [vmem:[#allocation2 + $0x18] sm:$0xff] %vm160, 0.0
        $region32: #{tpu_custom_call.1} parent=23 // pred_fallthru
          _
        %v165 = vld [vmem:[%s130] sm:$0xff]
        %v166 = vld [vmem:[%s130 + $0x8] sm:$0xff]
        %v167 = vld [vmem:[%s130 + $0x10] sm:$0xff]
        %v168 = vld [vmem:[%s130 + $0x18] sm:$0xff]
        %v169 = vld [vmem:[%s130 + $0x20] sm:$0xff]
        %v170 = vld [vmem:[%s130 + $0x28] sm:$0xff]
        %v171 = vld [vmem:[%s130 + $0x30] sm:$0xff]
        %v172 = vld [vmem:[%s130 + $0x38] sm:$0xff]
        %v173 = vld [vmem:[#allocation2] sm:$0xff]
        %v174 = vld [vmem:[#allocation2 + $0x8] sm:$0xff]
        %v175 = vld [vmem:[#allocation2 + $0x10] sm:$0xff]
        %v176 = vld [vmem:[#allocation2 + $0x18] sm:$0xff]
        %v177 = vadd.f32 %v165, %v166
        %178 = vadd.xlane.f32.xlu0 %v177
        %v179 = vpop.xlane.xlu0 %178
        %v180 = vadd.f32 %v167, %v168
        %181 = vadd.xlane.f32.xlu0 %v180
        %v182 = vpop.xlane.xlu0 %181
        %v183 = vadd.f32 %v169, %v170
        %184 = vadd.xlane.f32.xlu0 %v183
        %v185 = vpop.xlane.xlu0 %184
        %v186 = vadd.f32 %v171, %v172
        %187 = vadd.xlane.f32.xlu0 %v186
        %v188 = vpop.xlane.xlu0 %187
        %v189 = vadd.f32 %v173, %v179
        %v190 = vadd.f32 %v174, %v182
        %v191 = vadd.f32 %v175, %v185
        %v192 = vadd.f32 %v176, %v188
        %vm193 = vcmask 7168
        %194 = vst.msk [vmem:[#allocation2] sm:$0xff] %vm193, %v189
        %195 = vst.msk [vmem:[#allocation2 + $0x8] sm:$0xff] %vm193, %v190
        %196 = vst.msk [vmem:[#allocation2 + $0x10] sm:$0xff] %vm193, %v191
        %197 = vst.msk [vmem:[#allocation2 + $0x18] sm:$0xff] %vm193, %v192
        // Predicated region
        $region33: #{tpu_custom_call.1} parent=23 // pred_check
          %p198 = pneg %p156
        $region34: #{tpu_custom_call.1} parent=23 // pred_check_branch
          %200 = sbr.rel (%p198) target = $region36
        $region35: #{tpu_custom_call.1} parent=23 // pred_region
          %v201 = vld [vmem:[#allocation2] sm:$0xff]
          %v202 = vld [vmem:[#allocation2 + $0x8] sm:$0xff]
          %v203 = vld [vmem:[#allocation2 + $0x10] sm:$0xff]
          %v204 = vld [vmem:[#allocation2 + $0x18] sm:$0xff]
          %v205 = vmul.f32 %v201, 0.00390625
          %v206 = vmul.f32 %v202, 0.00390625
          %v207 = vmul.f32 %v203, 0.00390625
          %v208 = vmul.f32 %v204, 0.00390625
          %209 = vst.msk [vmem:[%s155] sm:$0xff] %vm193, %v205
          %210 = vst.msk [vmem:[%s155 + $0x8] sm:$0xff] %vm193, %v206
          %211 = vst.msk [vmem:[%s155 + $0x10] sm:$0xff] %vm193, %v207
          %212 = vst.msk [vmem:[%s155 + $0x18] sm:$0xff] %vm193, %v208
        $region36: #{tpu_custom_call.1} parent=23 // pred_fallthru
          _
        %p213 = scmp.lt.s32.totalorder %s19, 1
        %s214 = scalar_select %p213, %s19, 1
        %s215 = smul.addr %s214, 4
        %s216 = smul.addr %s215, 8
        %s217 = scalar_lea.vmem %s1, %s216
        // Predicated region
        $region37: #{tpu_custom_call.1} parent=23 // pred_check
          %p218 = pneg %p73
        $region38: #{tpu_custom_call.1} parent=23 // pred_check_branch
          %220 = sbr.rel (%p218) target = $region40
        $region39: #{tpu_custom_call.1} parent=23 // pred_region
          _
        $region40: #{tpu_custom_call.1} parent=23 // pred_fallthru
          _
      $region24: #{tpu_custom_call.1} parent=5 // pred_fallthru
        _
      %p221 = scmp.le.s32.totalorder 2, %s10
      // Predicated region
      $region41: #{tpu_custom_call.1} parent=5 // pred_check
        %p222 = pneg %p221
      $region42: #{tpu_custom_call.1} parent=5 // pred_check_branch
        %224 = sbr.rel (%p222) target = $region44
      $region43: #{tpu_custom_call.1} parent=5 // pred_region
        %s225 = ssub.s32 %s10, 2
        // Predicated region
        $region45: #{tpu_custom_call.1} parent=43 // pred_check
          %p226 = pneg %p79
        $region46: #{tpu_custom_call.1} parent=43 // pred_check_branch
          %228 = sbr.rel (%p226) target = $region48
        $region47: #{tpu_custom_call.1} parent=43 // pred_region
          %p229 = scmp.lt.s32.totalorder %s21, 1
          %s230 = scalar_select %p229, %s21, 1
          %s231 = smul.addr %s230, 4
          %s232 = smul.addr %s231, 8
          %s233 = scalar_lea.vmem %s1, %s232
        $region48: #{tpu_custom_call.1} parent=43 // pred_fallthru
          _
      $region44: #{tpu_custom_call.1} parent=5 // pred_fallthru
        _
    $region6: #{tpu_custom_call.1} parent=1 // loop_footer
      %s14 = sadd.s32 1, %s10
    $region7: #{tpu_custom_call.1} parent=1 // loop_footer_branch
      %9 = sbr.rel target = $region3
    $region8: #{tpu_custom_call.1} parent=1 // loop_exit
      _
    %234 = vsyncpa [#allocation4], 1
    %s235 = scalar_lea.sflag [#allocation4], 1
    %236 = vsyncpa %s235, 1

</llo_original>
